<compile_context>
chip_gen: v5e
topology: v5e:2x2
jax: 0.10.0
libtpu: 0.0.40
codegen_flags: <defaults>
</compile_context>

<pallas_src>
import functools
import math

import jax
import jax.numpy as jnp
from jax.experimental import pallas as pl
from jax.experimental.pallas import tpu as pltpu


def make_pe_table(d_model: int, max_len: int = 5000, dtype=jnp.float32) -> jnp.ndarray:
    """Deterministic PE table, same math as the PyTorch __init__ ((max_len, d_model)).

    Build it once in the model compute dtype (dtype=...) so the forward wrapper
    never has to re-cast the whole 5000xD table per call.
    """
    position = jnp.arange(0, max_len, dtype=jnp.float32)[:, None]             # (max_len, 1)
    div_term = jnp.exp(jnp.arange(0, d_model, 2, dtype=jnp.float32)
                       * (-math.log(10000.0) / d_model))                      # (ceil(D/2),)
    angles = position * div_term                                              # (max_len, ceil(D/2))
    pe = jnp.zeros((max_len, d_model), dtype=jnp.float32)
    pe = pe.at[:, 0::2].set(jnp.sin(angles))
    pe = pe.at[:, 1::2].set(jnp.cos(angles)[:, : d_model // 2])               # odd-D safe
    return pe.astype(dtype)


def _pe_add_kernel(x_ref, pe_ref, o_ref, *, batch_chunk: int, d_model: int,
                   use_slices: bool):
    # x_ref/o_ref : (ts, batch_chunk * d_model) tiles of the flattened input/output
    # pe_ref      : (ts, d_model) tile of the PE table (already in x.dtype)
    pe_tile = pe_ref[...]
    if batch_chunk == 1:
        o_ref[...] = x_ref[...] + pe_tile
    elif use_slices:
        # d_model is a multiple of 128: lane-aligned static slices, no VMEM temp,
        # no extra store traffic (vst is the scarcest VLIW slot).
        for b in range(batch_chunk):
            lo = b * d_model
            o_ref[:, lo:lo + d_model] = x_ref[:, lo:lo + d_model] + pe_tile
    else:
        # Non-128-aligned d_model: one replicated add (tile temp acceptable here).
        o_ref[...] = x_ref[...] + jnp.tile(pe_tile, (1, batch_chunk))


_SMALL_BYTES = 256 * 1024  # below this, XLA's fused add beats kernel-launch overhead


def _sublane_align(itemsize: int) -> int:
    # Packed-sublane multiple: f32 -> 8, bf16/f16 -> 16, int8/fp8 -> 32.
    return {4: 8, 2: 16, 1: 32}.get(itemsize, 8)


def _vmem_budget():
    """(vmem_capacity_bytes, per-tile x budget) — chip-generation aware."""
    try:
        cap = int(getattr(pltpu.get_tpu_info(), "vmem_capacity_bytes", 0)) or (64 << 20)
    except Exception:
        cap = 64 << 20  # conservative default: v7x per-TC physical VMEM
    # 4-8 MiB x tiles: measured f32-add roofline climbs to ~85-86% of HBM BW at
    # 512+ row tiles, and ~0.35us/step fixed overhead becomes noise.  Keep the
    # double-buffered in+out+pe working set a small fraction of physical VMEM.
    tile_budget = max(2 << 20, min(8 << 20, cap // 12))
    return cap, tile_budget


def _choose_tiling(S: int, B: int, D: int, itemsize: int, tile_budget: int):
    align = _sublane_align(itemsize)
    full_row = B * D * itemsize

    # Column (batch-chunk) tiling: only when even an `align`-row, full-width tile
    # blows the budget; chunks must keep the output lane dim a multiple of 128.
    bc = B
    if align * full_row > tile_budget:
        for cand in range(B, 0, -1):
            if B % cand == 0 and (cand * D) % 128 == 0 and \
                    align * cand * D * itemsize <= tile_budget:
                bc = cand
                break
    chunk_row = bc * D * itemsize

    # Seq tiling: biggest aligned tile under the budget.
    ts = max(align, (tile_budget // max(chunk_row, 1)) // align * align)
    if ts >= S:
        ts = S
    # Keep >= 2 grid steps for big single-block inputs: enables DMA/compute
    # pipelining and lets "parallel" semantics use both v7x TensorCores.
    if ts == S and bc == B and S * full_row >= (2 << 20):
        half = -(-((S + 1) // 2) // align) * align   # ceil(S/2) rounded up to align
        if align <= half < S:
            ts = half
    return ts, bc, align


def positional_encoding_forward(x: jnp.ndarray, pe: jnp.ndarray, *,
                                force_pallas: bool = False) -> jnp.ndarray:
    """x: (S, B, D); pe: (max_len, D). Returns x + pe[:S] broadcast over batch
    (eval-mode dropout = identity)."""
    S, B, D = x.shape
    max_len, d_pe = pe.shape
    assert d_pe == D and S <= max_len

    # Prefer building pe in the compute dtype at init (make_pe_table(dtype=...));
    # this is only a safety net (it re-reads the whole table when it triggers).
    if pe.dtype != x.dtype:
        pe = pe.astype(x.dtype)

    # Tiny inputs: kernel launch + per-grid-step overhead dwarfs a few-KiB add.
    if not force_pallas and x.size * x.dtype.itemsize < _SMALL_BYTES:
        return x + pe[:S][:, None, :]

    # Flatten (S, B, D) -> (S, B*D): free (row-major contiguous), lane-dense output.
    x2 = x.reshape(S, B * D)
    itemsize = x.dtype.itemsize

    cap, tile_budget = _vmem_budget()
    ts, bc, align = _choose_tiling(S, B, D, itemsize, tile_budget)

    # pe block sublane dim must be a multiple of the packed-sublane alignment or
    # equal the full first dim; only the tiny non-aligned single-block corner
    # case needs the pe[:S] slice.
    pe_in = pe if (ts % align == 0 or ts == max_len) else pe[:S]

    grid = (pl.cdiv(S, ts), B // bc)

    tile_bytes = ts * bc * D * itemsize
    pe_tile_bytes = ts * D * itemsize
    working = 4 * tile_bytes + 2 * pe_tile_bytes          # dbl-buffered x+out, pe
    vmem_limit = int(min(cap * 3 // 4, max(32 << 20, working + (8 << 20))))

    kernel = functools.partial(_pe_add_kernel, batch_chunk=bc, d_model=D,
                               use_slices=(D % 128 == 0))

    out2 = pl.pallas_call(
        kernel,
        out_shape=jax.ShapeDtypeStruct((S, B * D), x.dtype),
        grid=grid,
        in_specs=[
            pl.BlockSpec((ts, bc * D), lambda i, j: (i, j)),   # x tile
            pl.BlockSpec((ts, D), lambda i, j: (i, 0)),        # pe tile (seq rows only)
        ],
        out_specs=pl.BlockSpec((ts, bc * D), lambda i, j: (i, j)),
        compiler_params=pltpu.CompilerParams(
            dimension_semantics=("parallel", "parallel"),
            vmem_limit_bytes=vmem_limit,
        ),
    )(x2, pe_in)

    return out2.reshape(S, B, D)


if __name__ == "__main__":
    key = jax.random.PRNGKey(0)

    # Module-implied small shape: x is (seq_len, batch, d_model).
    seq_len, batch, d_model = 8, 2, 32
    pe_small = make_pe_table(d_model, max_len=5000)
    x_small = jax.random.normal(key, (seq_len, batch, d_model), dtype=jnp.float32)
    out_small = jax.block_until_ready(
        positional_encoding_forward(x_small, pe_small, force_pallas=True))
    ref_small = x_small + pe_small[:seq_len][:, None, :]
    assert out_small.shape == (seq_len, batch, d_model)
    assert jnp.allclose(out_small, ref_small, atol=1e-6, rtol=1e-6)

    # Larger f32 shape: exercises real seq tiling and the >=2-step split
    # (both v7x TensorCores + pipelining) with the lane-aligned slice path.
    S2, B2, D2 = 2048, 4, 128
    pe_big = make_pe_table(D2, max_len=5000)
    x_big = jax.random.normal(jax.random.PRNGKey(1), (S2, B2, D2), dtype=jnp.float32)
    out_big = jax.block_until_ready(positional_encoding_forward(x_big, pe_big))
    ref_big = x_big + pe_big[:S2][:, None, :]
    assert jnp.allclose(out_big, ref_big, atol=1e-6, rtol=1e-6)

    # bf16 shape with non-128 d_model: exercises the 16-row packed-sublane
    # alignment and the jnp.tile fallback path.
    S3, B3, D3 = 512, 2, 96
    pe_bf16 = make_pe_table(D3, max_len=5000, dtype=jnp.bfloat16)
    x_bf16 = jax.random.normal(jax.random.PRNGKey(2), (S3, B3, D3)).astype(jnp.bfloat16)
    out_bf16 = jax.block_until_ready(
        positional_encoding_forward(x_bf16, pe_bf16, force_pallas=True))
    ref_bf16 = x_bf16 + pe_bf16[:S3][:, None, :]
    assert jnp.allclose(out_bf16.astype(jnp.float32), ref_bf16.astype(jnp.float32),
                        atol=1e-2, rtol=1e-2)

    print("KERNEL_OK")
</pallas_src>

<mosaic_0001>
module attributes {stable_mosaic.version = 11 : i64} {
  func.func @_pe_add_kernel(%arg0: i32, %arg1: i32, %arg2: memref<8x64xf32, #tpu.memory_space<vmem>>, %arg3: memref<8x32xf32, #tpu.memory_space<vmem>>, %arg4: memref<8x64xf32, #tpu.memory_space<vmem>>) attributes {dimension_semantics = [#tpu.dimension_semantics<parallel>, #tpu.dimension_semantics<parallel>], iteration_bounds = array<i64: 1, 1>, scalar_prefetch = 0 : i64, scratch_operands = 0 : i64, tpu.core_type = #tpu.core_type<tc>, window_params = [{transform_indices = @transform_0, window_bounds = array<i64: 8, 64>}, {transform_indices = @transform_1, window_bounds = array<i64: 8, 32>}, {transform_indices = @transform_2, window_bounds = array<i64: 8, 64>}]} {
    %c0 = arith.constant 0 : index
    %c0_0 = arith.constant 0 : index
    %0 = vector.load %arg3[%c0, %c0_0] : memref<8x32xf32, #tpu.memory_space<vmem>>, vector<8x32xf32>
    %c0_1 = arith.constant 0 : index
    %c0_2 = arith.constant 0 : index
    %1 = vector.load %arg2[%c0_1, %c0_2] : memref<8x64xf32, #tpu.memory_space<vmem>>, vector<8x64xf32>
    %2 = tpu.concatenate %0, %0 in 1 : vector<8x32xf32>, vector<8x32xf32> -> vector<8x64xf32>
    %3 = arith.addf %1, %2 : vector<8x64xf32>
    %c0_3 = arith.constant 0 : index
    %c0_4 = arith.constant 0 : index
    %4 = vector.load %arg4[%c0_3, %c0_4] : memref<8x64xf32, #tpu.memory_space<vmem>>, vector<8x64xf32>
    tpu.vector_store %arg4[%c0_3, %c0_4], %3 {strides = array<i32>} : memref<8x64xf32, #tpu.memory_space<vmem>>, vector<8x64xf32>,
    return
  }
  func.func @transform_0(%arg0: i32, %arg1: i32) -> (i32, i32) {
    %c0_i32 = arith.constant 0 : i32
    return %arg0, %arg1 : i32, i32
  }
  func.func @transform_1(%arg0: i32, %arg1: i32) -> (i32, i32) {
    %c0_i32 = arith.constant 0 : i32
    %c0_i32_0 = arith.constant 0 : i32
    return %arg0, %c0_i32 : i32, i32
  }
  func.func @transform_2(%arg0: i32, %arg1: i32) -> (i32, i32) {
    %c0_i32 = arith.constant 0 : i32
    return %arg0, %arg1 : i32, i32
  }
}

</mosaic_0001>

<llo_original>
// kernel: tpu_custom_call.1
$region0: #{tpu_custom_call.1}
  #allocation0 [shape = 'u32[]', space=smem, size = 0x4, offset = 0x4, fixed_abs, tag = 'smem constant byte address 0x4 - core index']
  #allocation1 [shape = 'u32[72,128]{1,0:T(1,128)}', space=vmem, size = 0x9000, scoped, tag = 'internal scratch']
  %s0 = inlined_call_operand.vmem [shape: f32[8,64], index: 0, kind: input, shape index: {}]
  %s1 = inlined_call_operand.vmem [shape: f32[5000,32], index: 1, kind: input, shape index: {}]
  %s2 = inlined_call_operand.hbm [shape: f32[8,64], index: 2, kind: output, shape index: {}]
  %s3 = sld [smem:[#allocation0]]
  $region18: #{tpu_custom_call.1} parent=0
    _
  %s5 = ssub.s32 1, %s3
  %s6 = scalar_select 0, %s5, %s3
  $region1: #{tpu_custom_call.1} parent=0
    #allocation2 [shape = 'u8[4096]{0}', space=vmem, size = 0x1000, scoped, tag = 'output window, operand 0, single buffered']
    #allocation3 [shape = 's32[1]{0}', space=sflag, size = 0x4, scoped, tag = 'scoped memory for tpu_custom_call.1']
    %7 = vsyncpa [#allocation3], 0
    // Predicated region
    $region2: #{tpu_custom_call.1} parent=1 // pred_check
      _
    $region3: #{tpu_custom_call.1} parent=1 // pred_check_branch
      %9 = sbr.rel (0) target = $region5
    $region4: #{tpu_custom_call.1} parent=1 // pred_region
      _
    $region5: #{tpu_custom_call.1} parent=1 // pred_fallthru
      _
    // Predicated region
    $region6: #{tpu_custom_call.1} parent=1 // pred_check
      _
    $region7: #{tpu_custom_call.1} parent=1 // pred_check_branch
      %11 = sbr.rel (0) target = $region9
    $region8: #{tpu_custom_call.1} parent=1 // pred_region
      _
    $region9: #{tpu_custom_call.1} parent=1 // pred_fallthru
      _
    %v12 = vld [vmem:[%s1] sm:$0xff]
    %v13 = vld [vmem:[%s0] sm:$0xff]
    %15 = vrot.lane.b32.xlu0 %v12, 32
    %v16 = vpop.permute.xlu0 %15
    %vm18 = vcmask 261120
    %v19 = vsel %vm18, %v12, %v16
    %v20 = vadd.f32 %v13, %v19
    %vm21 = vcmask 523264
    %22 = vst.msk [vmem:[#allocation2] sm:$0xff] %vm21, %v20
    // Predicated region
    $region10: #{tpu_custom_call.1} parent=1 // pred_check
      _
    $region11: #{tpu_custom_call.1} parent=1 // pred_check_branch
      %24 = sbr.rel (0) target = $region13
    $region12: #{tpu_custom_call.1} parent=1 // pred_region
      %26 = vsyncadd [#allocation3], 0
      %s28 = sshll.u32 [#allocation2], 4
      %s29 = int_to_ptr.vmem [resolvable:$true] %s28
      %s30 = sshll.u32 %s2, 4
      %s31 = int_to_ptr.hbm [resolvable:$true] %s30
      %33 = dma.vmem_to_hbm [thread:$0]  %s29, 128, %s31, [#allocation3]
    $region13: #{tpu_custom_call.1} parent=1 // pred_fallthru
      _
    // Predicated region
    $region14: #{tpu_custom_call.1} parent=1 // pred_check
      _
    $region15: #{tpu_custom_call.1} parent=1 // pred_check_branch
      %35 = sbr.rel (0) target = $region17
    $region16: #{tpu_custom_call.1} parent=1 // pred_region
      %37 = dma.done [#allocation3], 128
    $region17: #{tpu_custom_call.1} parent=1 // pred_fallthru
      _
    %38 = vsyncpa [#allocation3], 1

</llo_original>
